<compile_context>
chip_gen: v7x
topology: tpu7x:2x2x1
jax: 0.10.0
libtpu: 0.0.40
codegen_flags: <defaults>
</compile_context>

<pallas_src>
import functools

import jax
import jax.numpy as jnp
import numpy as np
from jax.experimental import pallas as pl
from jax.experimental.pallas import tpu as pltpu


def _proj_kernel(x_ref, w_ref, b_ref, o_ref):
    # (TM, E) @ (E, H) -> (TM, H) f32, with the folded layer-0 bias added.
    o_ref[...] = (
        jnp.dot(x_ref[...], w_ref[...], preferred_element_type=jnp.float32)
        + b_ref[...]
    )


def _rnn_kernel(n_layers, chunk,
                xp_ref,     # (C, B, H)   f32  layer-0 pre-activation (x @ w_ih0 + b0)
                whh0_ref,   # (H, H)      bf16 layer-0 hidden->hidden (transposed)
                wstk_ref,   # (Lr, 2H, H) bf16 stacked [w_ih; w_hh] for layers 1..
                brest_ref,  # (Lr, B, H)  f32  folded + pre-broadcast bias for layers 1..
                out_ref,    # (C, B, H)   f32  outputs tile for this time chunk
                hid_ref,    # (L, B, H)   f32  final hidden state (VMEM-resident output)
                hbf_ref):   # (L, B, H)   bf16 hidden-state carry across chunks (scratch)
    c = pl.program_id(0)

    @pl.when(c == 0)
    def _():
        hbf_ref[...] = jnp.zeros_like(hbf_ref)    # h0 = 0 (PyTorch nn.RNN default)

    # Hoist loop-invariant weight / bias loads out of the chunk loop.
    w0 = whh0_ref[...]
    wstk = [wstk_ref[l] for l in range(n_layers - 1)]
    brest = [brest_ref[l] for l in range(n_layers - 1)]

    # Load the carried hidden state once per chunk; keep it in values inside the chunk.
    h = [hbf_ref[l] for l in range(n_layers)]     # list of (B, H) bf16

    # Static unroll of the chunk's time steps (the recurrence is inherently sequential).
    for s in range(chunk):
        # Layer 0: the input projection was hoisted; only the recurrent matmul remains.
        act = jnp.tanh(xp_ref[s]
                       + jnp.dot(h[0], w0, preferred_element_type=jnp.float32))
        x = act.astype(jnp.bfloat16)
        h[0] = x
        # Layers 1..L-1: fused [x || h] @ [w_ih; w_hh]  -> single K=2H MXU pass + bias.
        for layer in range(1, n_layers):
            lhs = jnp.concatenate([x, h[layer]], axis=-1)          # (B, 2H) bf16
            act = jnp.tanh(
                jnp.dot(lhs, wstk[layer - 1], preferred_element_type=jnp.float32)
                + brest[layer - 1])
            x = act.astype(jnp.bfloat16)
            h[layer] = x
        out_ref[s] = act                           # last layer's f32 state, (B, H)

    # Write the bf16 carry back once per chunk.
    for l in range(n_layers):
        hbf_ref[l] = h[l]

    @pl.when(c == pl.num_programs(0) - 1)
    def _():
        hid_ref[...] = hbf_ref[...].astype(jnp.float32)


def ainlp_encoder_forward(params, src, *, chunk=8):
    """Mirrors AINLPEncoder.forward(src) -> (outputs, hidden), eval mode.

    src: (T, B) int32 token ids (seq-first, torch nn.RNN default layout)
    returns: outputs (T, B, H) f32, hidden (L, B, H) f32
    """
    T, B = src.shape
    L = params["w_hh"].shape[0]
    H = params["w_hh"].shape[2]
    E = params["emb"].shape[1]
    C = min(chunk, T)
    # (8, 128) tile / layout assumptions; pad in the wrapper if violated.
    assert B % 8 == 0 and E % 128 == 0 and H % 128 == 0 and T % C == 0

    ids = src.astype(jnp.int32).reshape(T * B)
    bias = (params["b_ih"] + params["b_hh"]).astype(jnp.float32)     # (L, 1, H) folded once

    # ---- hoisted layer-0 input projection: X_proj = emb[ids] @ w_ih0 + b0 ------------
    emb_rows = jnp.take(params["emb"], ids, axis=0)                  # (T*B, E) bf16 gather
    TB = T * B
    TM = TB
    for cand in (512, 256, 128, 64, 32, 16, 8):
        if TB % cand == 0:
            TM = cand
            break
    x_proj = pl.pallas_call(
        _proj_kernel,
        grid=(TB // TM,),
        in_specs=[
            pl.BlockSpec((TM, E), lambda i: (i, 0)),
            pl.BlockSpec((E, H), lambda i: (0, 0)),
            pl.BlockSpec((1, H), lambda i: (0, 0)),
        ],
        out_specs=pl.BlockSpec((TM, H), lambda i: (i, 0)),
        out_shape=jax.ShapeDtypeStruct((TB, H), jnp.float32),
        compiler_params=pltpu.CompilerParams(dimension_semantics=("parallel",)),
    )(emb_rows, params["w_ih0"], bias[0])
    x_proj = x_proj.reshape(T, B, H)

    # ---- recurrence: stacked per-layer weights, pre-broadcast biases ------------------
    Lr = max(L - 1, 1)
    if L > 1:
        w_stk = jnp.concatenate(
            [params["w_ihr"][:L - 1], params["w_hh"][1:]], axis=1)   # (L-1, 2H, H) bf16
        b_rest = jnp.broadcast_to(bias[1:], (L - 1, B, H))           # (L-1, B, H) f32
    else:
        w_stk = jnp.zeros((1, 2 * H, H), jnp.bfloat16)               # dummy, never read
        b_rest = jnp.zeros((1, B, H), jnp.float32)

    kernel = functools.partial(_rnn_kernel, L, C)
    grid_spec = pltpu.PrefetchScalarGridSpec(
        num_scalar_prefetch=0,
        grid=(T // C,),
        in_specs=[
            pl.BlockSpec((C, B, H), lambda c: (c, 0, 0)),            # x_proj (pipelined)
            pl.BlockSpec((H, H), lambda c: (0, 0)),                  # w_hh layer 0 (resident)
            pl.BlockSpec((Lr, 2 * H, H), lambda c: (0, 0, 0)),       # stacked weights (resident)
            pl.BlockSpec((Lr, B, H), lambda c: (0, 0, 0)),           # biases (resident)
        ],
        out_specs=(
            pl.BlockSpec((C, B, H), lambda c: (c, 0, 0)),            # outputs, lane-dense chunk
            pl.BlockSpec((L, B, H), lambda c: (0, 0, 0)),            # hidden (resident)
        ),
        scratch_shapes=[pltpu.VMEM((L, B, H), jnp.bfloat16)],        # bf16 hidden carry
    )
    outputs, hidden = pl.pallas_call(
        kernel,
        grid_spec=grid_spec,
        out_shape=(
            jax.ShapeDtypeStruct((T, B, H), jnp.float32),
            jax.ShapeDtypeStruct((L, B, H), jnp.float32),
        ),
        compiler_params=pltpu.CompilerParams(
            dimension_semantics=("arbitrary",)),                     # sequential recurrence
    )(x_proj, params["w_hh"][0], w_stk, b_rest)
    return outputs, hidden


def make_params(key, input_dim, emb_dim, hid_dim, n_layers):
    """Deterministic synthetic parameters (PyTorch-like uniform init), bf16 weights."""
    ks = jax.random.split(key, 6)
    bound = 1.0 / np.sqrt(hid_dim)
    u = lambda k, shape: jax.random.uniform(k, shape, jnp.float32, -bound, bound)
    return {
        "emb": jax.random.normal(ks[0], (input_dim, emb_dim),
                                 jnp.float32).astype(jnp.bfloat16),
        # weights stored transposed: (in_dim, out_dim)
        "w_ih0": u(ks[1], (emb_dim, hid_dim)).astype(jnp.bfloat16),
        "w_ihr": u(ks[2], (max(n_layers - 1, 1), hid_dim, hid_dim)).astype(jnp.bfloat16),
        "w_hh": u(ks[3], (n_layers, hid_dim, hid_dim)).astype(jnp.bfloat16),
        "b_ih": u(ks[4], (n_layers, 1, hid_dim)),
        "b_hh": u(ks[5], (n_layers, 1, hid_dim)),
    }


def reference_forward(params, src):
    """Pure-JAX reference mirroring the kernel's bf16-weight / f32-accumulate math."""
    T, B = src.shape
    L = params["w_hh"].shape[0]
    H = params["w_hh"].shape[2]
    bias = (params["b_ih"] + params["b_hh"]).astype(jnp.float32)
    emb = jnp.take(params["emb"], src.astype(jnp.int32).reshape(T * B), axis=0)
    x_proj = (jnp.dot(emb, params["w_ih0"], preferred_element_type=jnp.float32)
              + bias[0]).reshape(T, B, H)
    if L > 1:
        w_stk = jnp.concatenate([params["w_ihr"][:L - 1], params["w_hh"][1:]], axis=1)
    hs = [jnp.zeros((B, H), jnp.bfloat16) for _ in range(L)]
    outs = []
    for t in range(T):
        act = jnp.tanh(x_proj[t] + jnp.dot(hs[0], params["w_hh"][0],
                                           preferred_element_type=jnp.float32))
        x = act.astype(jnp.bfloat16)
        hs[0] = x
        for layer in range(1, L):
            lhs = jnp.concatenate([x, hs[layer]], axis=-1)
            act = jnp.tanh(jnp.dot(lhs, w_stk[layer - 1],
                                   preferred_element_type=jnp.float32) + bias[layer])
            x = act.astype(jnp.bfloat16)
            hs[layer] = x
        outs.append(act)
    outputs = jnp.stack(outs, axis=0)                 # (T, B, H) f32
    hidden = jnp.stack(hs, axis=0).astype(jnp.float32)
    return outputs, hidden


if __name__ == "__main__":
    # Small, tile-aligned shapes consistent with the module's forward:
    #   src: (T, B) token ids; outputs: (T, B, hid_dim); hidden: (n_layers, B, hid_dim)
    input_dim, emb_dim, hid_dim, n_layers = 256, 128, 128, 2
    T, B = 16, 8

    key = jax.random.PRNGKey(0)
    kp, ks = jax.random.split(key, 2)
    params = make_params(kp, input_dim, emb_dim, hid_dim, n_layers)
    src = jax.random.randint(ks, (T, B), 0, input_dim, dtype=jnp.int32)

    outputs, hidden = ainlp_encoder_forward(params, src)
    jax.block_until_ready((outputs, hidden))

    out_ref, hid_ref = reference_forward(params, src)
    assert outputs.shape == (T, B, hid_dim)
    assert hidden.shape == (n_layers, B, hid_dim)
    np.testing.assert_allclose(np.asarray(outputs), np.asarray(out_ref),
                               rtol=1e-2, atol=1e-2)
    np.testing.assert_allclose(np.asarray(hidden), np.asarray(hid_ref),
                               rtol=1e-2, atol=1e-2)

    print("KERNEL_OK")
</pallas_src>

<mosaic_0001>
module attributes {stable_mosaic.version = 11 : i64} {
  func.func @_proj_kernel(%arg0: i32, %arg1: memref<128x128xbf16, #tpu.memory_space<vmem>>, %arg2: memref<128x128xbf16, #tpu.memory_space<vmem>>, %arg3: memref<1x128xf32, #tpu.memory_space<vmem>>, %arg4: memref<128x128xf32, #tpu.memory_space<vmem>>) attributes {dimension_semantics = [#tpu.dimension_semantics<parallel>], iteration_bounds = array<i64: 1>, scalar_prefetch = 0 : i64, scratch_operands = 0 : i64, tpu.core_type = #tpu.core_type<tc>, window_params = [{transform_indices = @transform_0, window_bounds = array<i64: 128, 128>}, {pipeline_mode = #tpu.pipeline_mode<synchronous>, transform_indices = @transform_1, window_bounds = array<i64: 128, 128>}, {pipeline_mode = #tpu.pipeline_mode<synchronous>, transform_indices = @transform_2, window_bounds = array<i64: 1, 128>}, {transform_indices = @transform_3, window_bounds = array<i64: 128, 128>}]} {
    %c0 = arith.constant 0 : index
    %c0_0 = arith.constant 0 : index
    %0 = vector.load %arg1[%c0, %c0_0] : memref<128x128xbf16, #tpu.memory_space<vmem>>, vector<128x128xbf16>
    %c0_1 = arith.constant 0 : index
    %c0_2 = arith.constant 0 : index
    %1 = vector.load %arg2[%c0_1, %c0_2] : memref<128x128xbf16, #tpu.memory_space<vmem>>, vector<128x128xbf16>
    %cst = arith.constant dense<0.000000e+00> : vector<128x128xf32>
    %2 = tpu.matmul %0, %1, %cst {dimension_numbers = #tpu.dot_dimension_numbers<[1], [0], [0], [1], [0, 0, 1, 1], [], []>} : vector<128x128xbf16>, vector<128x128xbf16>, vector<128x128xf32> -> vector<128x128xf32>
    %c0_3 = arith.constant 0 : index
    %c0_4 = arith.constant 0 : index
    %3 = vector.load %arg3[%c0_3, %c0_4] : memref<1x128xf32, #tpu.memory_space<vmem>>, vector<1x128xf32>
    %4 = vector.broadcast %3 : vector<1x128xf32> to vector<128x128xf32>
    %5 = arith.addf %2, %4 : vector<128x128xf32>
    %c0_5 = arith.constant 0 : index
    %c0_6 = arith.constant 0 : index
    %6 = vector.load %arg4[%c0_5, %c0_6] : memref<128x128xf32, #tpu.memory_space<vmem>>, vector<128x128xf32>
    tpu.vector_store %arg4[%c0_5, %c0_6], %5 {strides = array<i32>} : memref<128x128xf32, #tpu.memory_space<vmem>>, vector<128x128xf32>,
    return
  }
  func.func @transform_0(%arg0: i32) -> (i32, i32) {
    %c0_i32 = arith.constant 0 : i32
    %c0_i32_0 = arith.constant 0 : i32
    return %arg0, %c0_i32 : i32, i32
  }
  func.func @transform_1(%arg0: i32) -> (i32, i32) {
    %c0_i32 = arith.constant 0 : i32
    %c0_i32_0 = arith.constant 0 : i32
    %c0_i32_1 = arith.constant 0 : i32
    return %c0_i32, %c0_i32_0 : i32, i32
  }
  func.func @transform_2(%arg0: i32) -> (i32, i32) {
    %c0_i32 = arith.constant 0 : i32
    %c0_i32_0 = arith.constant 0 : i32
    %c0_i32_1 = arith.constant 0 : i32
    return %c0_i32, %c0_i32_0 : i32, i32
  }
  func.func @transform_3(%arg0: i32) -> (i32, i32) {
    %c0_i32 = arith.constant 0 : i32
    %c0_i32_0 = arith.constant 0 : i32
    return %arg0, %c0_i32 : i32, i32
  }
}

</mosaic_0001>

<llo_original>
// kernel: tpu_custom_call.1
$region0: #{tpu_custom_call.1}
  #allocation0 [shape = 'u32[]', space=smem, size = 0x4, offset = 0x4, fixed_abs, tag = 'smem constant byte address 0x4 - core index']
  #allocation1 [shape = 'u32[144,128]{1,0:T(1,128)}', space=vmem, size = 0x12000, scoped, tag = 'internal scratch']
  %s0 = inlined_call_operand.hbm [shape: bf16[128,128], index: 0, kind: input, shape index: {}]
  %s1 = inlined_call_operand.hbm [shape: bf16[128,128], index: 1, kind: input, shape index: {}]
  %s2 = inlined_call_operand.vmem [shape: f32[1,128], index: 2, kind: input, shape index: {}]
  %s3 = inlined_call_operand.hbm [shape: f32[128,128], index: 3, kind: output, shape index: {}]
  %s4 = sld [smem:[#allocation0]]
  $region30: #{tpu_custom_call.1} parent=0
    _
  %s6 = ssub.s32 1, %s4
  %s7 = scalar_select 0, %s6, %s4
  $region1: #{tpu_custom_call.1} parent=0
    #allocation2 [shape = 'u8[32768]{0}', space=vmem, size = 0x8000, scoped, tag = 'input window, operand 0, single buffered']
    #allocation3 [shape = 's32[1]{0}', space=sflag, size = 0x4, scoped, tag = 'scoped memory for tpu_custom_call.1']
    #allocation4 [shape = 's32[1]{0}', space=sflag, size = 0x4, scoped, tag = 'scoped memory for tpu_custom_call.1']
    #allocation5 [shape = 'u8[32768]{0}', space=vmem, size = 0x8000, scoped, tag = 'input window, operand 1, single buffered']
    #allocation6 [shape = 's32[1]{0}', space=sflag, size = 0x4, scoped, tag = 'scoped memory for tpu_custom_call.1']
    #allocation7 [shape = 'u8[65536]{0}', space=vmem, size = 0x10000, scoped, tag = 'output window, operand 0, single buffered']
    %8 = vsyncpa [#allocation3], 0
    %9 = vsyncpa [#allocation6], 0
    %10 = vsyncpa [#allocation4], 0
    // Predicated region
    $region2: #{tpu_custom_call.1} parent=1 // pred_check
      _
    $region3: #{tpu_custom_call.1} parent=1 // pred_check_branch
      %12 = sbr.rel (0) target = $region5
    $region4: #{tpu_custom_call.1} parent=1 // pred_region
      %s14 = ssub.s32 1024, 1024
      %15 = vsyncadd [#allocation3], %s14
      %s16 = sshll.u32 [#allocation2], 4
      %s17 = int_to_ptr.vmem [resolvable:$true] %s16
      %22 = dma.hbm_to_vmem [thread:$0]  %s0, 1024, %s17, [#allocation3], 64, 64, 4
    $region5: #{tpu_custom_call.1} parent=1 // pred_fallthru
      _
    // Predicated region
    $region6: #{tpu_custom_call.1} parent=1 // pred_check
      _
    $region7: #{tpu_custom_call.1} parent=1 // pred_check_branch
      %24 = sbr.rel (0) target = $region9
    $region8: #{tpu_custom_call.1} parent=1 // pred_region
      %s26 = ssub.s32 1024, 1024
      %27 = vsyncadd [#allocation6], %s26
      %s28 = sshll.u32 [#allocation5], 4
      %s29 = int_to_ptr.vmem [resolvable:$true] %s28
      %34 = dma.hbm_to_vmem [thread:$0]  %s1, 1024, %s29, [#allocation6], 64, 64, 4
    $region9: #{tpu_custom_call.1} parent=1 // pred_fallthru
      _
    // Predicated region
    $region10: #{tpu_custom_call.1} parent=1 // pred_check
      _
    $region11: #{tpu_custom_call.1} parent=1 // pred_check_branch
      %36 = sbr.rel (0) target = $region13
    $region12: #{tpu_custom_call.1} parent=1 // pred_region
      _
    $region13: #{tpu_custom_call.1} parent=1 // pred_fallthru
      _
    // Predicated region
    $region14: #{tpu_custom_call.1} parent=1 // pred_check
      _
    $region15: #{tpu_custom_call.1} parent=1 // pred_check_branch
      %38 = sbr.rel (0) target = $region17
    $region16: #{tpu_custom_call.1} parent=1 // pred_region
      %39 = dma.done [#allocation3], 1024
    $region17: #{tpu_custom_call.1} parent=1 // pred_fallthru
      _
    // Predicated region
    $region18: #{tpu_custom_call.1} parent=1 // pred_check
      _
    $region19: #{tpu_custom_call.1} parent=1 // pred_check_branch
      %41 = sbr.rel (0) target = $region21
    $region20: #{tpu_custom_call.1} parent=1 // pred_region
      %42 = dma.done [#allocation6], 1024
    $region21: #{tpu_custom_call.1} parent=1 // pred_fallthru
      _
    %v44 = vld [vmem:[#allocation2] sm:$0xf]
    %v45 = vld [vmem:[#allocation2 + $0x4] sm:$0xf]
    %v46 = vld [vmem:[#allocation2 + $0x8] sm:$0xf]
    %v47 = vld [vmem:[#allocation2 + $0xc] sm:$0xf]
    %v48 = vld [vmem:[#allocation2 + $0x10] sm:$0xf]
    %v49 = vld [vmem:[#allocation2 + $0x14] sm:$0xf]
    %v50 = vld [vmem:[#allocation2 + $0x18] sm:$0xf]
    %v51 = vld [vmem:[#allocation2 + $0x1c] sm:$0xf]
    %v52 = vld [vmem:[#allocation2 + $0x20] sm:$0xf]
    %v53 = vld [vmem:[#allocation2 + $0x24] sm:$0xf]
    %v54 = vld [vmem:[#allocation2 + $0x28] sm:$0xf]
    %v55 = vld [vmem:[#allocation2 + $0x2c] sm:$0xf]
    %v56 = vld [vmem:[#allocation2 + $0x30] sm:$0xf]
    %v57 = vld [vmem:[#allocation2 + $0x34] sm:$0xf]
    %v58 = vld [vmem:[#allocation2 + $0x38] sm:$0xf]
    %v59 = vld [vmem:[#allocation2 + $0x3c] sm:$0xf]
    %v60 = vld [vmem:[#allocation5] sm:$0xf]
    %v61 = vld [vmem:[#allocation5 + $0x4] sm:$0xf]
    %v62 = vld [vmem:[#allocation5 + $0x8] sm:$0xf]
    %v63 = vld [vmem:[#allocation5 + $0xc] sm:$0xf]
    %v64 = vld [vmem:[#allocation5 + $0x10] sm:$0xf]
    %v65 = vld [vmem:[#allocation5 + $0x14] sm:$0xf]
    %v66 = vld [vmem:[#allocation5 + $0x18] sm:$0xf]
    %v67 = vld [vmem:[#allocation5 + $0x1c] sm:$0xf]
    %v68 = vld [vmem:[#allocation5 + $0x20] sm:$0xf]
    %v69 = vld [vmem:[#allocation5 + $0x24] sm:$0xf]
    %v70 = vld [vmem:[#allocation5 + $0x28] sm:$0xf]
    %v71 = vld [vmem:[#allocation5 + $0x2c] sm:$0xf]
    %v72 = vld [vmem:[#allocation5 + $0x30] sm:$0xf]
    %v73 = vld [vmem:[#allocation5 + $0x34] sm:$0xf]
    %v74 = vld [vmem:[#allocation5 + $0x38] sm:$0xf]
    %v75 = vld [vmem:[#allocation5 + $0x3c] sm:$0xf]
    %v76 = vld [vmem:[%s2] sm:$0x1]
    %v78 = vlaneseq
    %v79 = vshrl.u32 %v78, 7
    %v80 = vsub.s32 0, %v79
    %v81 = vrot.slane %v76, %v80
    %v99 = vunpack.c.l.b16 %v44
    %v100 = vunpack.c.l.b16 %v45
    %v101 = vunpack.c.l.b16 %v46
    %v102 = vunpack.c.l.b16 %v47
    %v103 = vunpack.c.l.b16 %v48
    %v104 = vunpack.c.l.b16 %v49
    %v105 = vunpack.c.l.b16 %v50
    %v106 = vunpack.c.l.b16 %v51
    %v107 = vunpack.c.l.b16 %v52
    %v108 = vunpack.c.l.b16 %v53
    %v109 = vunpack.c.l.b16 %v54
    %v110 = vunpack.c.l.b16 %v55
    %v111 = vunpack.c.l.b16 %v56
    %v112 = vunpack.c.l.b16 %v57
    %v113 = vunpack.c.l.b16 %v58
    %v114 = vunpack.c.l.b16 %v59
    %v115 = vpack.c.b16 %v100, %v99
    %v116 = vpack.c.b16 %v102, %v101
    %v117 = vpack.c.b16 %v104, %v103
    %v118 = vpack.c.b16 %v106, %v105
    %v119 = vpack.c.b16 %v108, %v107
    %v120 = vpack.c.b16 %v110, %v109
    %v121 = vpack.c.b16 %v112, %v111
    %v122 = vpack.c.b16 %v114, %v113
    %v147 = vunpack.c.l.b16 %v60
    %v148 = vunpack.c.l.b16 %v61
    %v149 = vunpack.c.l.b16 %v62
    %v150 = vunpack.c.l.b16 %v63
    %v151 = vunpack.c.l.b16 %v64
    %v152 = vunpack.c.l.b16 %v65
    %v153 = vunpack.c.l.b16 %v66
    %v154 = vunpack.c.l.b16 %v67
    %v155 = vunpack.c.l.b16 %v68
    %v156 = vunpack.c.l.b16 %v69
    %v157 = vunpack.c.l.b16 %v70
    %v158 = vunpack.c.l.b16 %v71
    %v159 = vunpack.c.l.b16 %v72
    %v160 = vunpack.c.l.b16 %v73
    %v161 = vunpack.c.l.b16 %v74
    %v162 = vunpack.c.l.b16 %v75
    %v163 = vpack.c.b16 %v148, %v147
    %v164 = vpack.c.b16 %v150, %v149
    %v165 = vpack.c.b16 %v152, %v151
    %v166 = vpack.c.b16 %v154, %v153
    %v167 = vpack.c.b16 %v156, %v155
    %v168 = vpack.c.b16 %v158, %v157
    %v169 = vpack.c.b16 %v160, %v159
    %v170 = vpack.c.b16 %v162, %v161
    %179 = vmatprep.subr.bf16.mxu0 0
    %180 = vmatpush1.bf16.msra.mxu0 %v163
    %181 = vmatprep.subr.bf16.mxu0 0
    %182 = vmatpush1.bf16.msra.mxu0 %v164
    %183 = vmatprep.subr.bf16.mxu0 0
    %184 = vmatpush1.bf16.msra.mxu0 %v165
    %185 = vmatprep.subr.bf16.mxu0 0
    %186 = vmatpush1.bf16.msra.mxu0 %v166
    %187 = vmatprep.subr.bf16.mxu0 0
    %188 = vmatpush1.bf16.msra.mxu0 %v167
    %189 = vmatprep.subr.bf16.mxu0 0
    %190 = vmatpush1.bf16.msra.mxu0 %v168
    %191 = vmatprep.subr.bf16.mxu0 0
    %192 = vmatpush1.bf16.msra.mxu0 %v169
    %193 = vmatprep.subr.bf16.mxu0 0
    %194 = vmatpush1.bf16.msra.mxu0 %v170
    %195 = vmatprep.subr.bf16.mxu0 0
    %196 = vmatpush1.bf16.msra.mxu0 0
    %197 = vmatprep.subr.bf16.mxu0 0
    %198 = vmatpush1.bf16.msra.mxu0 0
    %199 = vmatprep.subr.bf16.mxu0 0
    %200 = vmatpush1.bf16.msra.mxu0 0
    %201 = vmatprep.subr.bf16.mxu0 0
    %202 = vmatpush1.bf16.msra.mxu0 0
    %203 = vmatprep.subr.bf16.mxu0 0
    %204 = vmatpush1.bf16.msra.mxu0 0
    %205 = vmatprep.subr.bf16.mxu0 0
    %206 = vmatpush1.bf16.msra.mxu0 0
    %207 = vmatprep.subr.bf16.mxu0 0
    %208 = vmatpush1.bf16.msra.mxu0 0
    %209 = vmatprep.subr.bf16.mxu0 0
    %210 = vmatpush1.bf16.msra.mxu0 0
    %211 = vmatprep.mubr.bf16.mxu0 0
    %212 = vmatmul.mubr.bf16.gmra.mrb[0].mxu0 %v115
    %v213 = vpop.f32.mrb[0].mxu0
    %v214 = vadd.f32 %v81, %v213
    %v215 = vpop.f32.mrb[0].mxu0
    %v216 = vpop.f32.mrb[0].mxu0
    %v217 = vadd.f32 %v81, %v216
    %v218 = vpop.f32.mrb[0].mxu0
    %219 = vmatprep.mubr.bf16.mxu0 0
    %220 = vmatmul.mubr.bf16.gmra.mrb[0].mxu0 %v116
    %v221 = vpop.f32.mrb[0].mxu0
    %v222 = vadd.f32 %v81, %v221
    %v223 = vpop.f32.mrb[0].mxu0
    %v224 = vpop.f32.mrb[0].mxu0
    %v225 = vadd.f32 %v81, %v224
    %v226 = vpop.f32.mrb[0].mxu0
    %227 = vmatprep.mubr.bf16.mxu0 0
    %228 = vmatmul.mubr.bf16.gmra.mrb[0].mxu0 %v117
    %v229 = vpop.f32.mrb[0].mxu0
    %v230 = vadd.f32 %v81, %v229
    %v231 = vpop.f32.mrb[0].mxu0
    %v232 = vpop.f32.mrb[0].mxu0
    %v233 = vadd.f32 %v81, %v232
    %v234 = vpop.f32.mrb[0].mxu0
    %235 = vmatprep.mubr.bf16.mxu0 0
    %236 = vmatmul.mubr.bf16.gmra.mrb[0].mxu0 %v118
    %v237 = vpop.f32.mrb[0].mxu0
    %v238 = vadd.f32 %v81, %v237
    %v239 = vpop.f32.mrb[0].mxu0
    %v240 = vpop.f32.mrb[0].mxu0
    %v241 = vadd.f32 %v81, %v240
    %v242 = vpop.f32.mrb[0].mxu0
    %243 = vmatprep.mubr.bf16.mxu0 0
    %244 = vmatmul.mubr.bf16.gmra.mrb[0].mxu0 %v119
    %v245 = vpop.f32.mrb[0].mxu0
    %v246 = vadd.f32 %v81, %v245
    %v247 = vpop.f32.mrb[0].mxu0
    %v248 = vpop.f32.mrb[0].mxu0
    %v249 = vadd.f32 %v81, %v248
    %v250 = vpop.f32.mrb[0].mxu0
    %251 = vmatprep.mubr.bf16.mxu0 0
    %252 = vmatmul.mubr.bf16.gmra.mrb[0].mxu0 %v120
    %v253 = vpop.f32.mrb[0].mxu0
    %v254 = vadd.f32 %v81, %v253
    %v255 = vpop.f32.mrb[0].mxu0
    %v256 = vpop.f32.mrb[0].mxu0
    %v257 = vadd.f32 %v81, %v256
    %v258 = vpop.f32.mrb[0].mxu0
    %259 = vmatprep.mubr.bf16.mxu0 0
    %260 = vmatmul.mubr.bf16.gmra.mrb[0].mxu0 %v121
    %v261 = vpop.f32.mrb[0].mxu0
    %v262 = vadd.f32 %v81, %v261
    %v263 = vpop.f32.mrb[0].mxu0
    %v264 = vpop.f32.mrb[0].mxu0
    %v265 = vadd.f32 %v81, %v264
    %v266 = vpop.f32.mrb[0].mxu0
    %267 = vmatprep.mubr.bf16.mxu0 0
    %268 = vmatmul.mubr.bf16.gmra.mrb[0].mxu0 %v122
    %v269 = vpop.f32.mrb[0].mxu0
    %v270 = vadd.f32 %v81, %v269
    %v271 = vpop.f32.mrb[0].mxu0
    %v272 = vpop.f32.mrb[0].mxu0
    %v273 = vadd.f32 %v81, %v272
    %v274 = vpop.f32.mrb[0].mxu0
    %275 = vdwg.mxu0
    %276 = vst [vmem:[#allocation7] sm:$0xff] %v214
    %277 = vst [vmem:[#allocation7 + $0x8] sm:$0xff] %v217
    %278 = vst [vmem:[#allocation7 + $0x10] sm:$0xff] %v222
    %279 = vst [vmem:[#allocation7 + $0x18] sm:$0xff] %v225
    %280 = vst [vmem:[#allocation7 + $0x20] sm:$0xff] %v230
    %281 = vst [vmem:[#allocation7 + $0x28] sm:$0xff] %v233
    %282 = vst [vmem:[#allocation7 + $0x30] sm:$0xff] %v238
    %283 = vst [vmem:[#allocation7 + $0x38] sm:$0xff] %v241
    %284 = vst [vmem:[#allocation7 + $0x40] sm:$0xff] %v246
    %285 = vst [vmem:[#allocation7 + $0x48] sm:$0xff] %v249
    %286 = vst [vmem:[#allocation7 + $0x50] sm:$0xff] %v254
    %287 = vst [vmem:[#allocation7 + $0x58] sm:$0xff] %v257
    %288 = vst [vmem:[#allocation7 + $0x60] sm:$0xff] %v262
    %289 = vst [vmem:[#allocation7 + $0x68] sm:$0xff] %v265
    %290 = vst [vmem:[#allocation7 + $0x70] sm:$0xff] %v270
    %291 = vst [vmem:[#allocation7 + $0x78] sm:$0xff] %v273
    // Predicated region
    $region22: #{tpu_custom_call.1} parent=1 // pred_check
      _
    $region23: #{tpu_custom_call.1} parent=1 // pred_check_branch
      %293 = sbr.rel (0) target = $region25
    $region24: #{tpu_custom_call.1} parent=1 // pred_region
      %s295 = ssub.s32 2048, 2048
      %296 = vsyncadd [#allocation4], %s295
      %s297 = sshll.u32 [#allocation7], 4
      %s298 = int_to_ptr.vmem [resolvable:$true] %s297
      %303 = dma.vmem_to_hbm [thread:$0]  %s298, 2048, %s3, [#allocation4], 128, 128, 8
    $region25: #{tpu_custom_call.1} parent=1 // pred_fallthru
      _
    // Predicated region
    $region26: #{tpu_custom_call.1} parent=1 // pred_check
      _
    $region27: #{tpu_custom_call.1} parent=1 // pred_check_branch
      %305 = sbr.rel (0) target = $region29
    $region28: #{tpu_custom_call.1} parent=1 // pred_region
      %306 = dma.done [#allocation4], 2048
    $region29: #{tpu_custom_call.1} parent=1 // pred_fallthru
      _
    %307 = vsyncpa [#allocation3], 1
    %308 = vsyncpa [#allocation6], 1
    %309 = vsyncpa [#allocation4], 1

</llo_original>
